<compile_context>
chip_gen: v7x
topology: tpu7x:2x2x1
jax: 0.10.0
libtpu: 0.0.40
codegen_flags: <defaults>
</compile_context>

<pallas_src>
import functools
import math

import jax
import jax.numpy as jnp
from jax.experimental import pallas as pl
from jax.experimental.pallas import tpu as pltpu

_NEG_INF = -1e30          # finite "-inf": keeps max()/exp() NaN-free on padded lanes


def _round_up(n, m):
    return (n + m - 1) // m * m


def _vmem_limit_bytes():
    """Per-generation VMEM ceiling: ~75% of physical (96 MiB v5e/v6e, 48 MiB v7x)."""
    try:
        cap = getattr(pltpu.get_tpu_info(), "vmem_capacity_bytes", None)
        if cap:
            return int(cap) * 3 // 4
    except Exception:
        pass
    return 48 * 1024 * 1024          # conservative default, safe on every generation


def _plan(S, Dp, Din_p, vmem_limit):
    """Pick tiles -> (tm1, tq, tk, Sp, resident_kv)."""
    Sp = _round_up(max(S, 128), 128)       # never feed the MXU fewer than 128 rows
    tq = 256 if Sp % 256 == 0 else 128
    tk = tq
    # Resident-KV budget: K/V full-seq blocks + Q/O blocks (double-buffered bf16),
    # resident Wo, plus f32 flash intermediates (s, p, acc) headroom.
    resident_bytes = (
        4 * Sp * Dp * 2            # K + V (1, Sp, Dp) bf16, x2 buffers each
        + 4 * tq * Dp * 2          # Q + O blocks, x2 buffers each
        + 2 * Dp * Dp * 2          # Wo, x2 buffers
        + 6 * tq * Dp * 4          # acc / attn / out f32 live values
        + 6 * tq * tk * 4          # s / p f32 intermediates
    )
    resident = resident_bytes <= int(vmem_limit * 0.8)
    if not resident:
        # Long-sequence fallback: stream K/V tiles over a kv grid axis.
        tq, tk = 256, 256
        Sp = _round_up(max(S, 128), tk)
    # Kernel-1 row tile: weight is resident, so a bigger M tile just amortizes
    # per-grid-step overhead.  Must divide Sp and fit the VMEM budget.
    tm1 = 128
    for cand in (512, 384, 256):
        if Sp % cand:
            continue
        k1_bytes = 2 * (cand * Din_p + Din_p * Dp + cand * Dp) * 2 + 2 * Dp * 4
        if k1_bytes <= int(vmem_limit * 0.8):
            tm1 = cand
            break
    return tm1, tq, tk, Sp, resident


# --------------------------------------------------------------------------
# Kernel 1: fused QKV projection (one GEMM tile; grid axis j selects Q/K/V)
# --------------------------------------------------------------------------
def _proj_kernel(x_ref, w_ref, b_ref, o_ref):
    # x: (1, tm, Din_p) bf16 ; w: (Din_p, Dp) bf16 ; b: (1, Dp) f32 ; o: (1, tm, Dp) bf16
    y = jnp.dot(x_ref[0], w_ref[...],
                preferred_element_type=jnp.float32) + b_ref[...]
    o_ref[0] = y.astype(o_ref.dtype)


# --------------------------------------------------------------------------
# Kernel 2a: K/V-resident flash attention + output projection (preferred)
# --------------------------------------------------------------------------
def _flash_resident_kernel(q_ref, k_ref, v_ref, wo_ref, bo_ref, o_ref, *,
                           tk, kv_len, n_full, tail_mask):
    q = q_ref[0]                       # (tq, Dp) bf16, already scaled by 1/sqrt(d)
    tq, dp = q.shape

    def step(start, carry, valid):     # one online-softmax update on a kv chunk
        m, l, acc = carry
        k_t = k_ref[0, pl.ds(start, tk), :]          # (tk, Dp) from resident K
        v_t = v_ref[0, pl.ds(start, tk), :]
        s = jax.lax.dot_general(q, k_t, (((1,), (1,)), ((), ())),
                                preferred_element_type=jnp.float32)   # (tq, tk)
        if valid is not None:          # only the tail tile pays for the mask
            s = jnp.where(valid, s, _NEG_INF)
        m_new = jnp.maximum(m, jnp.max(s, axis=-1, keepdims=True))
        alpha = jnp.exp(m - m_new)
        p = jnp.exp(s - m_new)
        l_new = alpha * l + jnp.sum(p, axis=-1, keepdims=True)
        acc_new = alpha * acc + jnp.dot(p.astype(jnp.bfloat16), v_t,
                                        preferred_element_type=jnp.float32)
        return m_new, l_new, acc_new

    carry0 = (jnp.full((tq, 1), _NEG_INF, jnp.float32),
              jnp.zeros((tq, 1), jnp.float32),
              jnp.zeros((tq, dp), jnp.float32))

    def body(i, carry):                # interior kv tiles: no padding mask
        return step(pl.multiple_of(i * tk, tk), carry, None)

    carry = jax.lax.fori_loop(0, n_full, body, carry0)

    if tail_mask:                      # last kv tile contains sequence padding
        start = n_full * tk
        kv_idx = start + jax.lax.broadcasted_iota(jnp.int32, (tq, tk), 1)
        carry = step(start, carry, kv_idx < kv_len)

    m, l, acc = carry
    # approx=True adds ~2^-12 relative error to the softmax norm (fine here).
    attn = acc * pl.reciprocal(l, approx=True)
    # TODO(synk): nn.Dropout(0.3) is identity at inference; training-mode
    #             stochastic masking (pltpu.prng_*) not implemented here.
    out = jnp.dot(attn.astype(jnp.bfloat16), wo_ref[...],
                  preferred_element_type=jnp.float32) + bo_ref[...]
    o_ref[0] = out.astype(o_ref.dtype)


# --------------------------------------------------------------------------
# Kernel 2b: streaming flash attention (fallback for very long sequences)
# --------------------------------------------------------------------------
def _flash_stream_kernel(q_ref, k_ref, v_ref, wo_ref, bo_ref, o_ref,
                         m_sc, l_sc, acc_sc, *, kv_len, tk, mask_last):
    ki = pl.program_id(2)
    last = pl.num_programs(2) - 1

    @pl.when(ki == 0)
    def _init():
        m_sc[...] = jnp.full_like(m_sc, _NEG_INF)
        l_sc[...] = jnp.zeros_like(l_sc)
        acc_sc[...] = jnp.zeros_like(acc_sc)

    q = q_ref[0]          # (tq, Dp) bf16, pre-scaled
    k = k_ref[0]          # (tk, Dp) bf16
    v = v_ref[0]          # (tk, Dp) bf16

    s = jax.lax.dot_general(q, k, (((1,), (1,)), ((), ())),
                            preferred_element_type=jnp.float32)     # (tq, tk)
    if mask_last:         # pay for the padding mask only on the last kv tile
        def _mask(sv):
            kv_idx = ki * tk + jax.lax.broadcasted_iota(jnp.int32, sv.shape, 1)
            return jnp.where(kv_idx < kv_len, sv, _NEG_INF)
        s = jax.lax.cond(ki == last, _mask, lambda sv: sv, s)

    m_prev = m_sc[...]
    m_new = jnp.maximum(m_prev, jnp.max(s, axis=-1, keepdims=True))
    alpha = jnp.exp(m_prev - m_new)
    p = jnp.exp(s - m_new)
    l_sc[...] = alpha * l_sc[...] + jnp.sum(p, axis=-1, keepdims=True)
    acc_sc[...] = alpha * acc_sc[...] + jnp.dot(
        p.astype(jnp.bfloat16), v, preferred_element_type=jnp.float32)
    m_sc[...] = m_new

    @pl.when(ki == last)
    def _finalize():
        attn = acc_sc[...] * pl.reciprocal(l_sc[...], approx=True)
        out = jnp.dot(attn.astype(jnp.bfloat16), wo_ref[...],
                      preferred_element_type=jnp.float32) + bo_ref[...]
        o_ref[0] = out.astype(o_ref.dtype)


# --------------------------------------------------------------------------
# Wrapper
# --------------------------------------------------------------------------
def attention_forward(x, params, out_dtype=jnp.bfloat16):
    """x: [B, S, D_in] float32; params: f32 weights stored as [in, out]."""
    B, S, D_in = x.shape
    D_out = params["wq"].shape[1]

    Dp = _round_up(D_out, 128)        # lane-dense feature axis
    Din_p = _round_up(D_in, 128)
    vmem_limit = _vmem_limit_bytes()
    tm1, tq, tk, Sp, resident = _plan(S, Dp, Din_p, vmem_limit)
    scale = 1.0 / math.sqrt(float(D_out))

    def pad2(a, rows, cols):
        return jnp.pad(a, ((0, rows - a.shape[0]), (0, cols - a.shape[1])))

    # Fused QKV weight/bias: padded, bf16 weights, f32 bias; scale folded into Q.
    wqkv = jnp.concatenate(
        [pad2(params["wq"] * scale, Din_p, Dp),
         pad2(params["wk"], Din_p, Dp),
         pad2(params["wv"], Din_p, Dp)], axis=1).astype(jnp.bfloat16)
    bqkv = jnp.concatenate(
        [pad2(params["bq"] * scale, 1, Dp),
         pad2(params["bk"], 1, Dp),
         pad2(params["bv"], 1, Dp)], axis=1).astype(jnp.float32)
    wo = pad2(params["wo"], Dp, Dp).astype(jnp.bfloat16)
    bo = pad2(params["bo"], 1, Dp).astype(jnp.float32)

    xp = jnp.pad(x, ((0, 0), (0, Sp - S), (0, Din_p - D_in))).astype(jnp.bfloat16)

    # --- Kernel 1: fused QKV projection -> single (B, Sp, 3*Dp) tensor -------
    # j outermost keeps the (Din_p, Dp) weight block resident across the whole
    # (B, M) sweep (Pallas skips re-DMA while its block index is unchanged).
    # TODO(synk): for Din_p*Dp*2B beyond ~VMEM/4, also tile Din_p with an f32
    #             accumulator (not needed for typical model widths).
    qkv = pl.pallas_call(
        _proj_kernel,
        out_shape=jax.ShapeDtypeStruct((B, Sp, 3 * Dp), jnp.bfloat16),
        grid_spec=pltpu.PrefetchScalarGridSpec(
            num_scalar_prefetch=0,
            grid=(3, B, Sp // tm1),
            in_specs=[
                pl.BlockSpec((1, tm1, Din_p), lambda j, b, i: (b, i, 0)),
                pl.BlockSpec((Din_p, Dp), lambda j, b, i: (0, j)),
                pl.BlockSpec((1, Dp), lambda j, b, i: (0, j)),
            ],
            out_specs=pl.BlockSpec((1, tm1, Dp), lambda j, b, i: (b, i, j)),
        ),
        compiler_params=pltpu.CompilerParams(
            dimension_semantics=("parallel", "parallel", "parallel"),
            vmem_limit_bytes=vmem_limit),
    )(xp, wqkv, bqkv)

    needs_mask = Sp != S

    # --- Kernel 2: flash attention + output projection -----------------------
    if resident:
        n_tiles = Sp // tk
        n_full = n_tiles - 1 if needs_mask else n_tiles
        out = pl.pallas_call(
            functools.partial(_flash_resident_kernel, tk=tk, kv_len=S,
                              n_full=n_full, tail_mask=needs_mask),
            out_shape=jax.ShapeDtypeStruct((B, Sp, Dp), jnp.bfloat16),
            grid_spec=pltpu.PrefetchScalarGridSpec(
                num_scalar_prefetch=0,
                grid=(B, Sp // tq),
                in_specs=[
                    # Q / K / V all read from the fused qkv tensor via column
                    # block offsets 0 / 1 / 2 -- no wrapper-side slicing copies.
                    pl.BlockSpec((1, tq, Dp), lambda b, qi: (b, qi, 0)),   # Q
                    pl.BlockSpec((1, Sp, Dp), lambda b, qi: (b, 0, 1)),    # K resident
                    pl.BlockSpec((1, Sp, Dp), lambda b, qi: (b, 0, 2)),    # V resident
                    pl.BlockSpec((Dp, Dp), lambda b, qi: (0, 0)),          # Wo
                    pl.BlockSpec((1, Dp), lambda b, qi: (0, 0)),           # bo
                ],
                out_specs=pl.BlockSpec((1, tq, Dp), lambda b, qi: (b, qi, 0)),
            ),
            compiler_params=pltpu.CompilerParams(
                dimension_semantics=("parallel", "parallel"),
                vmem_limit_bytes=vmem_limit),
        )(qkv, qkv, qkv, wo, bo)
    else:
        out = pl.pallas_call(
            functools.partial(_flash_stream_kernel, kv_len=S, tk=tk,
                              mask_last=needs_mask),
            out_shape=jax.ShapeDtypeStruct((B, Sp, Dp), jnp.bfloat16),
            grid_spec=pltpu.PrefetchScalarGridSpec(
                num_scalar_prefetch=0,
                grid=(B, Sp // tq, Sp // tk),
                in_specs=[
                    pl.BlockSpec((1, tq, Dp), lambda b, qi, ki: (b, qi, 0)),
                    pl.BlockSpec((1, tk, Dp), lambda b, qi, ki: (b, ki, 1),
                                 pipeline_mode=pl.Buffered(3)),   # deeper K pipeline
                    pl.BlockSpec((1, tk, Dp), lambda b, qi, ki: (b, ki, 2),
                                 pipeline_mode=pl.Buffered(3)),   # deeper V pipeline
                    pl.BlockSpec((Dp, Dp), lambda b, qi, ki: (0, 0)),
                    pl.BlockSpec((1, Dp), lambda b, qi, ki: (0, 0)),
                ],
                out_specs=pl.BlockSpec((1, tq, Dp), lambda b, qi, ki: (b, qi, 0)),
                scratch_shapes=[
                    pltpu.VMEM((tq, 1), jnp.float32),    # running max  m
                    pltpu.VMEM((tq, 1), jnp.float32),    # running sum  l
                    pltpu.VMEM((tq, Dp), jnp.float32),   # running acc
                ],
            ),
            compiler_params=pltpu.CompilerParams(
                dimension_semantics=("parallel", "parallel", "arbitrary"),
                vmem_limit_bytes=vmem_limit),
        )(qkv, qkv, qkv, wo, bo)

    if Sp != S or Dp != D_out:
        out = out[:, :S, :D_out]
    return out.astype(out_dtype)


# --------------------------------------------------------------------------
# Params / reference / test harness
# --------------------------------------------------------------------------
def init_params(key, input_dim, output_dim):
    """nn.Linear-style init (uniform +/- 1/sqrt(fan_in)); weights stored [in, out]."""
    ks = jax.random.split(key, 8)

    def lin(kw, kb, fan_in, fan_out):
        bound = 1.0 / math.sqrt(fan_in)
        w = jax.random.uniform(kw, (fan_in, fan_out), jnp.float32, -bound, bound)
        b = jax.random.uniform(kb, (1, fan_out), jnp.float32, -bound, bound)
        return w, b

    wq, bq = lin(ks[0], ks[1], input_dim, output_dim)
    wk, bk = lin(ks[2], ks[3], input_dim, output_dim)
    wv, bv = lin(ks[4], ks[5], input_dim, output_dim)
    wo, bo = lin(ks[6], ks[7], output_dim, output_dim)
    return dict(wq=wq, bq=bq, wk=wk, bk=bk, wv=wv, bv=bv, wo=wo, bo=bo)


def attention_ref(x, p):
    """Pure-JAX f32 reference (matches the PyTorch module in eval mode)."""
    q = x @ p["wq"] + p["bq"]
    k = x @ p["wk"] + p["bk"]
    v = x @ p["wv"] + p["bv"]
    s = (q @ jnp.swapaxes(k, -2, -1)) / jnp.sqrt(jnp.float32(q.shape[-1]))
    w = jax.nn.softmax(s, axis=-1)
    a = w @ v
    return a @ p["wo"] + p["bo"]


if __name__ == "__main__":
    B, S, D_in, D_out = 2, 8, 32, 32
    key = jax.random.PRNGKey(0)
    kx, kp = jax.random.split(key)
    x = jax.random.normal(kx, (B, S, D_in), dtype=jnp.float32)
    params = init_params(kp, D_in, D_out)

    out = jax.block_until_ready(attention_forward(x, params))
    ref = attention_ref(x, params)

    assert out.shape == (B, S, D_out)
    out_f32 = out.astype(jnp.float32)
    # bf16 MXU operands + bf16 output writeback -> relaxed tolerance vs f32 ref.
    assert jnp.allclose(out_f32, ref, atol=3e-2, rtol=3e-2), (
        float(jnp.max(jnp.abs(out_f32 - ref))))
    print("KERNEL_OK")
</pallas_src>

<mosaic_0001>
module attributes {stable_mosaic.version = 11 : i64} {
  func.func @_proj_kernel(%arg0: i32, %arg1: i32, %arg2: i32, %arg3: memref<1x128x128xbf16, #tpu.memory_space<vmem>>, %arg4: memref<128x128xbf16, #tpu.memory_space<vmem>>, %arg5: memref<1x128xf32, #tpu.memory_space<vmem>>, %arg6: memref<1x128x128xbf16, #tpu.memory_space<vmem>>) attributes {dimension_semantics = [#tpu.dimension_semantics<parallel>, #tpu.dimension_semantics<parallel>, #tpu.dimension_semantics<parallel>], iteration_bounds = array<i64: 3, 2, 1>, scalar_prefetch = 0 : i64, scratch_operands = 0 : i64, tpu.core_type = #tpu.core_type<tc>, window_params = [{transform_indices = @transform_0, window_bounds = array<i64: 1, 128, 128>}, {transform_indices = @transform_1, window_bounds = array<i64: 128, 128>}, {transform_indices = @transform_2, window_bounds = array<i64: 1, 128>}, {transform_indices = @transform_3, window_bounds = array<i64: 1, 128, 128>}]} {
    %c0 = arith.constant 0 : index
    %c0_0 = arith.constant 0 : index
    %c0_1 = arith.constant 0 : index
    %0 = vector.load %arg3[%c0, %c0_0, %c0_1] : memref<1x128x128xbf16, #tpu.memory_space<vmem>>, vector<1x128x128xbf16>
    %1 = vector.shape_cast %0 : vector<1x128x128xbf16> to vector<128x128xbf16>
    %c0_2 = arith.constant 0 : index
    %c0_3 = arith.constant 0 : index
    %2 = vector.load %arg4[%c0_2, %c0_3] : memref<128x128xbf16, #tpu.memory_space<vmem>>, vector<128x128xbf16>
    %cst = arith.constant dense<0.000000e+00> : vector<128x128xf32>
    %3 = tpu.matmul %1, %2, %cst {dimension_numbers = #tpu.dot_dimension_numbers<[1], [0], [0], [1], [0, 0, 1, 1], [], []>} : vector<128x128xbf16>, vector<128x128xbf16>, vector<128x128xf32> -> vector<128x128xf32>
    %c0_4 = arith.constant 0 : index
    %c0_5 = arith.constant 0 : index
    %4 = vector.load %arg5[%c0_4, %c0_5] : memref<1x128xf32, #tpu.memory_space<vmem>>, vector<1x128xf32>
    %5 = vector.broadcast %4 : vector<1x128xf32> to vector<128x128xf32>
    %6 = arith.addf %3, %5 : vector<128x128xf32>
    %7 = arith.truncf %6 : vector<128x128xf32> to vector<128x128xbf16>
    %c0_6 = arith.constant 0 : index
    %c0_7 = arith.constant 0 : index
    %c0_8 = arith.constant 0 : index
    %8 = vector.load %arg6[%c0_6, %c0_7, %c0_8] : memref<1x128x128xbf16, #tpu.memory_space<vmem>>, vector<1x128x128xbf16>
    %9 = vector.shape_cast %8 : vector<1x128x128xbf16> to vector<128x128xbf16>
    %10 = vector.shape_cast %7 : vector<128x128xbf16> to vector<1x128x128xbf16>
    tpu.vector_store %arg6[%c0_6, %c0_7, %c0_8], %10 {strides = array<i32>} : memref<1x128x128xbf16, #tpu.memory_space<vmem>>, vector<1x128x128xbf16>,
    return
  }
  func.func @transform_0(%arg0: i32, %arg1: i32, %arg2: i32) -> (i32, i32, i32) {
    %c0_i32 = arith.constant 0 : i32
    %c0_i32_0 = arith.constant 0 : i32
    return %arg1, %arg2, %c0_i32 : i32, i32, i32
  }
  func.func @transform_1(%arg0: i32, %arg1: i32, %arg2: i32) -> (i32, i32) {
    %c0_i32 = arith.constant 0 : i32
    %c0_i32_0 = arith.constant 0 : i32
    return %c0_i32, %arg0 : i32, i32
  }
  func.func @transform_2(%arg0: i32, %arg1: i32, %arg2: i32) -> (i32, i32) {
    %c0_i32 = arith.constant 0 : i32
    %c0_i32_0 = arith.constant 0 : i32
    return %c0_i32, %arg0 : i32, i32
  }
  func.func @transform_3(%arg0: i32, %arg1: i32, %arg2: i32) -> (i32, i32, i32) {
    %c0_i32 = arith.constant 0 : i32
    return %arg1, %arg2, %arg0 : i32, i32, i32
  }
}

</mosaic_0001>

<llo_original>
// kernel: tpu_custom_call.1
$region0: #{tpu_custom_call.1}
  #allocation0 [shape = 'u32[]', space=smem, size = 0x4, offset = 0x4, fixed_abs, tag = 'smem constant byte address 0x4 - core index']
  #allocation1 [shape = 'u32[144,128]{1,0:T(1,128)}', space=vmem, size = 0x12000, scoped, tag = 'internal scratch']
  %s0 = inlined_call_operand.hbm [shape: bf16[2,128,128], index: 0, kind: input, shape index: {}]
  %s1 = inlined_call_operand.hbm [shape: bf16[128,384], index: 1, kind: input, shape index: {}]
  %s2 = inlined_call_operand.vmem [shape: f32[1,384], index: 2, kind: input, shape index: {}]
  %s3 = inlined_call_operand.hbm [shape: bf16[2,128,384], index: 3, kind: output, shape index: {}]
  %s4 = sld [smem:[#allocation0]]
  $region53: #{tpu_custom_call.1} parent=0
    _
  %s6 = ssub.s32 1, %s4
  %s7 = scalar_select 0, %s6, %s4
  $region1: #{tpu_custom_call.1} parent=0
    #allocation2 [shape = 'u8[65536]{0}', space=vmem, size = 0x10000, scoped, tag = 'input window, operand 0']
    #allocation3 [shape = 's32[2]{0}', space=sflag, size = 0x8, scoped, tag = 'scoped memory for tpu_custom_call.1']
    #allocation4 [shape = 's32[2]{0}', space=sflag, size = 0x8, scoped, tag = 'scoped memory for tpu_custom_call.1']
    #allocation5 [shape = 'u8[65536]{0}', space=vmem, size = 0x10000, scoped, tag = 'input window, operand 1']
    #allocation6 [shape = 's32[2]{0}', space=sflag, size = 0x8, scoped, tag = 'scoped memory for tpu_custom_call.1']
    #allocation7 [shape = 'u8[65536]{0}', space=vmem, size = 0x10000, scoped, tag = 'output window, operand 0']
    %8 = vsyncpa [#allocation3], 0
    %s9 = scalar_lea.sflag [#allocation3], 1
    %10 = vsyncpa %s9, 0
    %11 = vsyncpa [#allocation6], 0
    %s12 = scalar_lea.sflag [#allocation6], 1
    %13 = vsyncpa %s12, 0
    %14 = vsyncpa [#allocation4], 0
    %s15 = scalar_lea.sflag [#allocation4], 1
    %16 = vsyncpa %s15, 0
    loop: start=0, step=1, limit=8
    $region2: #{tpu_custom_call.1} parent=1 // loop_pre_header
      _
    $region3: #{tpu_custom_call.1} parent=1 // loop_header
      %s18 = sphi 0, %s22
      %p19 = scmp.ge.s32.totalorder %s18, 8
      %s25 = sphi 0, %s44
      %s26 = sphi 0, %s40
      %s27 = sphi 0, %s36
      %s28 = sphi 0, %s25
      %s29 = sphi 0, %s26
      %s30 = sphi 0, %s27
      %s31 = sphi 0, %s28
      %s32 = sphi 0, %s29
      %s33 = sphi 0, %s30
      %s49 = sphi 0, %s51
      %s52 = sphi 0, %s49
      %s53 = sphi 0, %s52
      %s69 = sphi 0, %s53
      %s75 = sphi 0, %s77
      %s78 = sphi 0, %s75
      %s79 = sphi 0, %s78
      %s95 = sphi 0, %s79
      %s101 = sphi 0, %s103
      %s104 = sphi 0, %s101
      %s105 = sphi 0, %s104
      %s121 = sphi 0, %s105
      %s131 = sphi 0, %s133
      %s134 = sphi 0, %s131
      %s135 = sphi 0, %s134
      %s151 = sphi 0, %s135
    $region4: #{tpu_custom_call.1} parent=1 // loop_header_branch
      %21 = sbr.rel (%p19) target = $region8
    $region5: #{tpu_custom_call.1} parent=1 // loop_body
      %s23 = ssub.s32 %s18, 1
      %s24 = ssub.s32 %s18, 2
      %s34 = sadd.s32 1, %s27
      %p35 = scmp.ge.s32.totalorder %s34, 1
      %s36 = scalar_select %p35, 0, %s34
      %s37 = sadd.s32 1, %s26
      %s38 = scalar_select %p35, %s37, %s26
      %p39 = scmp.ge.s32.totalorder %s38, 2
      %s40 = scalar_select %p39, 0, %s38
      %s41 = sadd.s32 1, %s25
      %s42 = scalar_select %p39, %s41, %s25
      %p43 = scmp.ge.s32.totalorder %s42, 3
      %s44 = scalar_select %p43, 0, %s42
      %s45 = ssub.s32 %s26, %s40
      %s46 = ssub.s32 %s27, %s36
      %s47 = sor.u32 %s45, %s46
      %p48 = scmp.eq.s32.totalorder %s47, 0
      %s50 = sadd.s32 %s49, 1
      %s51 = scalar_select %p48, %s49, %s50
      %p54 = pneg %p48
      %p55 = scmp.eq.s32.totalorder %s18, 5
      %p56 = por %p54, %p55
      %p57 = scmp.ne.s32.totalorder %s49, %s52
      %p58 = scmp.eq.s32.totalorder %s18, 0
      %p59 = por %p57, %p58
      %p60 = scmp.ne.s32.totalorder %s49, %s52
      %p61 = scmp.eq.s32.totalorder %s23, 5
      %p62 = por %p60, %p61
      %p63 = scmp.ne.s32.totalorder %s52, %s53
      %p64 = scmp.eq.s32.totalorder %s23, 0
      %p65 = por %p63, %p64
      %p66 = scmp.ne.s32.totalorder %s52, %s53
      %p67 = scmp.eq.s32.totalorder %s24, 5
      %p68 = por %p66, %p67
      %p70 = scmp.ne.s32.totalorder %s53, %s69
      %p71 = scmp.eq.s32.totalorder %s24, 0
      %p72 = por %p70, %p71
      %s73 = ssub.s32 %s25, %s44
      %p74 = scmp.eq.s32.totalorder %s73, 0
      %s76 = sadd.s32 %s75, 1
      %s77 = scalar_select %p74, %s75, %s76
      %p80 = pneg %p74
      %p81 = scmp.eq.s32.totalorder %s18, 5
      %p82 = por %p80, %p81
      %p83 = scmp.ne.s32.totalorder %s75, %s78
      %p84 = scmp.eq.s32.totalorder %s18, 0
      %p85 = por %p83, %p84
      %p86 = scmp.ne.s32.totalorder %s75, %s78
      %p87 = scmp.eq.s32.totalorder %s23, 5
      %p88 = por %p86, %p87
      %p89 = scmp.ne.s32.totalorder %s78, %s79
      %p90 = scmp.eq.s32.totalorder %s23, 0
      %p91 = por %p89, %p90
      %p92 = scmp.ne.s32.totalorder %s78, %s79
      %p93 = scmp.eq.s32.totalorder %s24, 5
      %p94 = por %p92, %p93
      %p96 = scmp.ne.s32.totalorder %s79, %s95
      %p97 = scmp.eq.s32.totalorder %s24, 0
      %p98 = por %p96, %p97
      %s99 = ssub.s32 %s25, %s44
      %p100 = scmp.eq.s32.totalorder %s99, 0
      %s102 = sadd.s32 %s101, 1
      %s103 = scalar_select %p100, %s101, %s102
      %p106 = pneg %p100
      %p107 = scmp.eq.s32.totalorder %s18, 5
      %p108 = por %p106, %p107
      %p109 = scmp.ne.s32.totalorder %s101, %s104
      %p110 = scmp.eq.s32.totalorder %s18, 0
      %p111 = por %p109, %p110
      %p112 = scmp.ne.s32.totalorder %s101, %s104
      %p113 = scmp.eq.s32.totalorder %s23, 5
      %p114 = por %p112, %p113
      %p115 = scmp.ne.s32.totalorder %s104, %s105
      %p116 = scmp.eq.s32.totalorder %s23, 0
      %p117 = por %p115, %p116
      %p118 = scmp.ne.s32.totalorder %s104, %s105
      %p119 = scmp.eq.s32.totalorder %s24, 5
      %p120 = por %p118, %p119
      %p122 = scmp.ne.s32.totalorder %s105, %s121
      %p123 = scmp.eq.s32.totalorder %s24, 0
      %p124 = por %p122, %p123
      %s125 = ssub.s32 %s26, %s40
      %s126 = ssub.s32 %s27, %s36
      %s127 = sor.u32 %s125, %s126
      %s128 = ssub.s32 %s25, %s44
      %s129 = sor.u32 %s127, %s128
      %p130 = scmp.eq.s32.totalorder %s129, 0
      %s132 = sadd.s32 %s131, 1
      %s133 = scalar_select %p130, %s131, %s132
      %p136 = pneg %p130
      %p137 = scmp.eq.s32.totalorder %s18, 5
      %p138 = por %p136, %p137
      %p139 = scmp.ne.s32.totalorder %s131, %s134
      %p140 = scmp.eq.s32.totalorder %s18, 0
      %p141 = por %p139, %p140
      %p142 = scmp.ne.s32.totalorder %s131, %s134
      %p143 = scmp.eq.s32.totalorder %s23, 5
      %p144 = por %p142, %p143
      %p145 = scmp.ne.s32.totalorder %s134, %s135
      %p146 = scmp.eq.s32.totalorder %s23, 0
      %p147 = por %p145, %p146
      %p148 = scmp.ne.s32.totalorder %s134, %s135
      %p149 = scmp.eq.s32.totalorder %s24, 5
      %p150 = por %p148, %p149
      %p152 = scmp.ne.s32.totalorder %s135, %s151
      %p153 = scmp.eq.s32.totalorder %s24, 0
      %p154 = por %p152, %p153
      %p155 = scmp.le.s32.totalorder 1, %s18
      %p156 = scmp.lt.s32.totalorder %s18, 7
      %p157 = pnand %p155, %p156
      %p158 = pneg %p157
      // Predicated region
      $region9: #{tpu_custom_call.1} parent=5 // pred_check
        _
      $region10: #{tpu_custom_call.1} parent=5 // pred_check_branch
        %160 = sbr.rel (%p157) target = $region12
      $region11: #{tpu_custom_call.1} parent=5 // pred_region
        %s161 = ssub.s32 %s18, 1
      $region12: #{tpu_custom_call.1} parent=5 // pred_fallthru
        _
      %p162 = scmp.lt.s32.totalorder %s18, 6
      // Predicated region
      $region13: #{tpu_custom_call.1} parent=5 // pred_check
        %p163 = pneg %p162
      $region14: #{tpu_custom_call.1} parent=5 // pred_check_branch
        %165 = sbr.rel (%p163) target = $region16
      $region15: #{tpu_custom_call.1} parent=5 // pred_region
        // Predicated region
        $region17: #{tpu_custom_call.1} parent=15 // pred_check
          %p166 = pneg %p59
        $region18: #{tpu_custom_call.1} parent=15 // pred_check_branch
          %168 = sbr.rel (%p166) target = $region20
        $region19: #{tpu_custom_call.1} parent=15 // pred_region
          %s169 = sand.u32 %s49, 1
          %s170 = scalar_lea.sflag [#allocation3], %s169
          %s171 = sand.u32 %s49, 1
          %s172 = smul.addr %s171, 64
          %s173 = scalar_lea.vmem [#allocation2], %s172
          %s174 = smul.u32 16, %s27
          %s176 = ssub.s32 1024, 1024
          %177 = vsyncadd %s170, %s176
          %s178 = smul.addr %s26, 16
          %s179 = sadd.s32 %s174, %s178
          %s180 = smul.addr %s179, 64
          %s181 = scalar_lea.hbm %s0, %s180
          %s182 = sshll.u32 %s173, 4
          %s183 = int_to_ptr.vmem [resolvable:$true] %s182
          %188 = dma.hbm_to_vmem [thread:$0]  %s181, 1024, %s183, %s170, 64, 64, 4
        $region20: #{tpu_custom_call.1} parent=15 // pred_fallthru
          _
        // Predicated region
        $region21: #{tpu_custom_call.1} parent=15 // pred_check
          %p189 = pneg %p85
        $region22: #{tpu_custom_call.1} parent=15 // pred_check_branch
          %191 = sbr.rel (%p189) target = $region24
        $region23: #{tpu_custom_call.1} parent=15 // pred_region
          %s192 = sand.u32 %s75, 1
          %s193 = scalar_lea.sflag [#allocation6], %s192
          %s194 = sand.u32 %s75, 1
          %s195 = smul.addr %s194, 64
          %s196 = scalar_lea.vmem [#allocation5], %s195
          %s198 = ssub.s32 1024, 1024
          %199 = vsyncadd %s193, %s198
          %s200 = smul.addr %s25, 64
          %s201 = scalar_lea.hbm %s1, %s200
          %s202 = sshll.u32 %s196, 4
          %s203 = int_to_ptr.vmem [resolvable:$true] %s202
          %208 = dma.hbm_to_vmem [thread:$0]  %s201, 1024, %s203, %s193, 192, 64, 4
        $region24: #{tpu_custom_call.1} parent=15 // pred_fallthru
          _
        // Predicated region
        $region25: #{tpu_custom_call.1} parent=15 // pred_check
          %p209 = pneg %p111
        $region26: #{tpu_custom_call.1} parent=15 // pred_check_branch
          %211 = sbr.rel (%p209) target = $region28
        $region27: #{tpu_custom_call.1} parent=15 // pred_region
          %p212 = scmp.lt.s32.totalorder %s25, 2
          %s213 = scalar_select %p212, %s25, 2
          %s214 = scalar_lea.vmem %s2, %s213
        $region28: #{tpu_custom_call.1} parent=15 // pred_fallthru
          _
      $region16: #{tpu_custom_call.1} parent=5 // pred_fallthru
        _
      %p215 = scmp.le.s32.totalorder 1, %s18
      %p216 = scmp.lt.s32.totalorder %s18, 7
      %p217 = pnand %p215, %p216
      %p218 = pneg %p217
      // Predicated region
      $region29: #{tpu_custom_call.1} parent=5 // pred_check
        _
      $region30: #{tpu_custom_call.1} parent=5 // pred_check_branch
        %220 = sbr.rel (%p217) target = $region32
      $region31: #{tpu_custom_call.1} parent=5 // pred_region
        %s221 = ssub.s32 %s18, 1
        %s222 = sand.u32 %s52, 1
        %s223 = scalar_lea.sflag [#allocation3], %s222
        %s224 = sand.u32 %s52, 1
        %s225 = smul.addr %s224, 64
        %s226 = scalar_lea.vmem [#allocation2], %s225
        // Predicated region
        $region33: #{tpu_custom_call.1} parent=31 // pred_check
          %p227 = pneg %p65
        $region34: #{tpu_custom_call.1} parent=31 // pred_check_branch
          %229 = sbr.rel (%p227) target = $region36
        $region35: #{tpu_custom_call.1} parent=31 // pred_region
          %230 = dma.done %s223, 1024
        $region36: #{tpu_custom_call.1} parent=31 // pred_fallthru
          _
        %s231 = sand.u32 %s78, 1
        %s232 = scalar_lea.sflag [#allocation6], %s231
        %s233 = sand.u32 %s78, 1
        %s234 = smul.addr %s233, 64
        %s235 = scalar_lea.vmem [#allocation5], %s234
        // Predicated region
        $region37: #{tpu_custom_call.1} parent=31 // pred_check
          %p236 = pneg %p91
        $region38: #{tpu_custom_call.1} parent=31 // pred_check_branch
          %238 = sbr.rel (%p236) target = $region40
        $region39: #{tpu_custom_call.1} parent=31 // pred_region
          %239 = dma.done %s232, 1024
        $region40: #{tpu_custom_call.1} parent=31 // pred_fallthru
          _
        %s240 = sand.u32 %s52, 1
        %s241 = scalar_lea.sflag [#allocation3], %s240
        %s242 = sand.u32 %s52, 1
        %s243 = smul.addr %s242, 64
        %s244 = scalar_lea.vmem [#allocation2], %s243
        %p245 = pneg %p65
        %p246 = pneg %p62
        %s247 = sand.u32 %s78, 1
        %s248 = scalar_lea.sflag [#allocation6], %s247
        %s249 = sand.u32 %s78, 1
        %s250 = smul.addr %s249, 64
        %s251 = scalar_lea.vmem [#allocation5], %s250
        %p252 = pneg %p91
        %p253 = pneg %p88
        %p254 = scmp.lt.s32.totalorder %s28, 2
        %s255 = scalar_select %p254, %s28, 2
        %s256 = scalar_lea.vmem %s2, %s255
        %p257 = pneg %p117
        %p258 = pneg %p114
        %p259 = pneg %p147
        %p260 = pneg %p144
        %s261 = sand.u32 %s134, 1
        %s262 = scalar_lea.sflag [#allocation4], %s261
        %s263 = sand.u32 %s134, 1
        %s264 = smul.addr %s263, 64
        %s265 = scalar_lea.vmem [#allocation7], %s264
        %s266 = smul.u32 16, %s30
        %p267 = scmp.lt.s32.totalorder %s28, 2
        %s268 = scalar_select %p267, %s28, 2
        %s269 = scalar_lea.vmem %s2, %s268
        %s270 = smul.u32 16, %s30
        %v272 = vld [vmem:[%s226] sm:$0xf]
        %v273 = vld [vmem:[%s226 + $0x4] sm:$0xf]
        %v274 = vld [vmem:[%s226 + $0x8] sm:$0xf]
        %v275 = vld [vmem:[%s226 + $0xc] sm:$0xf]
        %v276 = vld [vmem:[%s226 + $0x10] sm:$0xf]
        %v277 = vld [vmem:[%s226 + $0x14] sm:$0xf]
        %v278 = vld [vmem:[%s226 + $0x18] sm:$0xf]
        %v279 = vld [vmem:[%s226 + $0x1c] sm:$0xf]
        %v280 = vld [vmem:[%s226 + $0x20] sm:$0xf]
        %v281 = vld [vmem:[%s226 + $0x24] sm:$0xf]
        %v282 = vld [vmem:[%s226 + $0x28] sm:$0xf]
        %v283 = vld [vmem:[%s226 + $0x2c] sm:$0xf]
        %v284 = vld [vmem:[%s226 + $0x30] sm:$0xf]
        %v285 = vld [vmem:[%s226 + $0x34] sm:$0xf]
        %v286 = vld [vmem:[%s226 + $0x38] sm:$0xf]
        %v287 = vld [vmem:[%s226 + $0x3c] sm:$0xf]
        %v288 = vld [vmem:[%s235] sm:$0xf]
        %v289 = vld [vmem:[%s235 + $0x4] sm:$0xf]
        %v290 = vld [vmem:[%s235 + $0x8] sm:$0xf]
        %v291 = vld [vmem:[%s235 + $0xc] sm:$0xf]
        %v292 = vld [vmem:[%s235 + $0x10] sm:$0xf]
        %v293 = vld [vmem:[%s235 + $0x14] sm:$0xf]
        %v294 = vld [vmem:[%s235 + $0x18] sm:$0xf]
        %v295 = vld [vmem:[%s235 + $0x1c] sm:$0xf]
        %v296 = vld [vmem:[%s235 + $0x20] sm:$0xf]
        %v297 = vld [vmem:[%s235 + $0x24] sm:$0xf]
        %v298 = vld [vmem:[%s235 + $0x28] sm:$0xf]
        %v299 = vld [vmem:[%s235 + $0x2c] sm:$0xf]
        %v300 = vld [vmem:[%s235 + $0x30] sm:$0xf]
        %v301 = vld [vmem:[%s235 + $0x34] sm:$0xf]
        %v302 = vld [vmem:[%s235 + $0x38] sm:$0xf]
        %v303 = vld [vmem:[%s235 + $0x3c] sm:$0xf]
        %v304 = vld [vmem:[%s269] sm:$0x1]
        %v306 = vlaneseq
        %v307 = vshrl.u32 %v306, 7
        %v308 = vsub.s32 0, %v307
        %v309 = vrot.slane %v304, %v308
        %v327 = vunpack.c.l.b16 %v272
        %v328 = vunpack.c.l.b16 %v273
        %v329 = vunpack.c.l.b16 %v274
        %v330 = vunpack.c.l.b16 %v275
        %v331 = vunpack.c.l.b16 %v276
        %v332 = vunpack.c.l.b16 %v277
        %v333 = vunpack.c.l.b16 %v278
        %v334 = vunpack.c.l.b16 %v279
        %v335 = vunpack.c.l.b16 %v280
        %v336 = vunpack.c.l.b16 %v281
        %v337 = vunpack.c.l.b16 %v282
        %v338 = vunpack.c.l.b16 %v283
        %v339 = vunpack.c.l.b16 %v284
        %v340 = vunpack.c.l.b16 %v285
        %v341 = vunpack.c.l.b16 %v286
        %v342 = vunpack.c.l.b16 %v287
        %v343 = vpack.c.b16 %v328, %v327
        %v344 = vpack.c.b16 %v330, %v329
        %v345 = vpack.c.b16 %v332, %v331
        %v346 = vpack.c.b16 %v334, %v333
        %v347 = vpack.c.b16 %v336, %v335
        %v348 = vpack.c.b16 %v338, %v337
        %v349 = vpack.c.b16 %v340, %v339
        %v350 = vpack.c.b16 %v342, %v341
        %v375 = vunpack.c.l.b16 %v288
        %v376 = vunpack.c.l.b16 %v289
        %v377 = vunpack.c.l.b16 %v290
        %v378 = vunpack.c.l.b16 %v291
        %v379 = vunpack.c.l.b16 %v292
        %v380 = vunpack.c.l.b16 %v293
        %v381 = vunpack.c.l.b16 %v294
        %v382 = vunpack.c.l.b16 %v295
        %v383 = vunpack.c.l.b16 %v296
        %v384 = vunpack.c.l.b16 %v297
        %v385 = vunpack.c.l.b16 %v298
        %v386 = vunpack.c.l.b16 %v299
        %v387 = vunpack.c.l.b16 %v300
        %v388 = vunpack.c.l.b16 %v301
        %v389 = vunpack.c.l.b16 %v302
        %v390 = vunpack.c.l.b16 %v303
        %v391 = vpack.c.b16 %v376, %v375
        %v392 = vpack.c.b16 %v378, %v377
        %v393 = vpack.c.b16 %v380, %v379
        %v394 = vpack.c.b16 %v382, %v381
        %v395 = vpack.c.b16 %v384, %v383
        %v396 = vpack.c.b16 %v386, %v385
        %v397 = vpack.c.b16 %v388, %v387
        %v398 = vpack.c.b16 %v390, %v389
        %407 = vmatprep.subr.bf16.mxu0 0
        %408 = vmatpush1.bf16.msra.mxu0 %v391
        %409 = vmatprep.subr.bf16.mxu0 0
        %410 = vmatpush1.bf16.msra.mxu0 %v392
        %411 = vmatprep.subr.bf16.mxu0 0
        %412 = vmatpush1.bf16.msra.mxu0 %v393
        %413 = vmatprep.subr.bf16.mxu0 0
        %414 = vmatpush1.bf16.msra.mxu0 %v394
        %415 = vmatprep.subr.bf16.mxu0 0
        %416 = vmatpush1.bf16.msra.mxu0 %v395
        %417 = vmatprep.subr.bf16.mxu0 0
        %418 = vmatpush1.bf16.msra.mxu0 %v396
        %419 = vmatprep.subr.bf16.mxu0 0
        %420 = vmatpush1.bf16.msra.mxu0 %v397
        %421 = vmatprep.subr.bf16.mxu0 0
        %422 = vmatpush1.bf16.msra.mxu0 %v398
        %423 = vmatprep.subr.bf16.mxu0 0
        %424 = vmatpush1.bf16.msra.mxu0 0
        %425 = vmatprep.subr.bf16.mxu0 0
        %426 = vmatpush1.bf16.msra.mxu0 0
        %427 = vmatprep.subr.bf16.mxu0 0
        %428 = vmatpush1.bf16.msra.mxu0 0
        %429 = vmatprep.subr.bf16.mxu0 0
        %430 = vmatpush1.bf16.msra.mxu0 0
        %431 = vmatprep.subr.bf16.mxu0 0
        %432 = vmatpush1.bf16.msra.mxu0 0
        %433 = vmatprep.subr.bf16.mxu0 0
        %434 = vmatpush1.bf16.msra.mxu0 0
        %435 = vmatprep.subr.bf16.mxu0 0
        %436 = vmatpush1.bf16.msra.mxu0 0
        %437 = vmatprep.subr.bf16.mxu0 0
        %438 = vmatpush1.bf16.msra.mxu0 0
        %439 = vmatprep.mubr.bf16.mxu0 0
        %440 = vmatmul.mubr.bf16.gmra.mrb[0].mxu0 %v343
        %v441 = vpop.f32.mrb[0].mxu0
        %v442 = vadd.f32 %v309, %v441
        %v443 = vpop.f32.mrb[0].mxu0
        %v444 = vpop.f32.mrb[0].mxu0
        %v445 = vadd.f32 %v309, %v444
        %v446 = vpop.f32.mrb[0].mxu0
        %447 = vmatprep.mubr.bf16.mxu0 0
        %448 = vmatmul.mubr.bf16.gmra.mrb[0].mxu0 %v344
        %v449 = vpop.f32.mrb[0].mxu0
        %v450 = vadd.f32 %v309, %v449
        %v451 = vpop.f32.mrb[0].mxu0
        %v452 = vpop.f32.mrb[0].mxu0
        %v453 = vadd.f32 %v309, %v452
        %v454 = vpop.f32.mrb[0].mxu0
        %455 = vmatprep.mubr.bf16.mxu0 0
        %456 = vmatmul.mubr.bf16.gmra.mrb[0].mxu0 %v345
        %v457 = vpop.f32.mrb[0].mxu0
        %v458 = vadd.f32 %v309, %v457
        %v459 = vpop.f32.mrb[0].mxu0
        %v460 = vpop.f32.mrb[0].mxu0
        %v461 = vadd.f32 %v309, %v460
        %v462 = vpop.f32.mrb[0].mxu0
        %463 = vmatprep.mubr.bf16.mxu0 0
        %464 = vmatmul.mubr.bf16.gmra.mrb[0].mxu0 %v346
        %v465 = vpop.f32.mrb[0].mxu0
        %v466 = vadd.f32 %v309, %v465
        %v467 = vpop.f32.mrb[0].mxu0
        %v468 = vpop.f32.mrb[0].mxu0
        %v469 = vadd.f32 %v309, %v468
        %v470 = vpop.f32.mrb[0].mxu0
        %471 = vmatprep.mubr.bf16.mxu0 0
        %472 = vmatmul.mubr.bf16.gmra.mrb[0].mxu0 %v347
        %v473 = vpop.f32.mrb[0].mxu0
        %v474 = vadd.f32 %v309, %v473
        %v475 = vpop.f32.mrb[0].mxu0
        %v476 = vpop.f32.mrb[0].mxu0
        %v477 = vadd.f32 %v309, %v476
        %v478 = vpop.f32.mrb[0].mxu0
        %479 = vmatprep.mubr.bf16.mxu0 0
        %480 = vmatmul.mubr.bf16.gmra.mrb[0].mxu0 %v348
        %v481 = vpop.f32.mrb[0].mxu0
        %v482 = vadd.f32 %v309, %v481
        %v483 = vpop.f32.mrb[0].mxu0
        %v484 = vpop.f32.mrb[0].mxu0
        %v485 = vadd.f32 %v309, %v484
        %v486 = vpop.f32.mrb[0].mxu0
        %487 = vmatprep.mubr.bf16.mxu0 0
        %488 = vmatmul.mubr.bf16.gmra.mrb[0].mxu0 %v349
        %v489 = vpop.f32.mrb[0].mxu0
        %v490 = vadd.f32 %v309, %v489
        %v491 = vpop.f32.mrb[0].mxu0
        %v492 = vpop.f32.mrb[0].mxu0
        %v493 = vadd.f32 %v309, %v492
        %v494 = vpop.f32.mrb[0].mxu0
        %495 = vmatprep.mubr.bf16.mxu0 0
        %496 = vmatmul.mubr.bf16.gmra.mrb[0].mxu0 %v350
        %v497 = vpop.f32.mrb[0].mxu0
        %v498 = vadd.f32 %v309, %v497
        %v499 = vpop.f32.mrb[0].mxu0
        %v500 = vpop.f32.mrb[0].mxu0
        %v501 = vadd.f32 %v309, %v500
        %v502 = vpop.f32.mrb[0].mxu0
        %503 = vdwg.mxu0
        %v504 = vpack.c.bf16 %v445, %v442
        %v505 = vpack.c.bf16 %v453, %v450
        %v506 = vpack.c.bf16 %v461, %v458
        %v507 = vpack.c.bf16 %v469, %v466
        %v508 = vpack.c.bf16 %v477, %v474
        %v509 = vpack.c.bf16 %v485, %v482
        %v510 = vpack.c.bf16 %v493, %v490
        %v511 = vpack.c.bf16 %v501, %v498
        %v520 = vunpack.c.l.b16 %v504
        %v521 = vunpack.c.h.b16 %v504
        %v522 = vunpack.c.l.b16 %v505
        %v523 = vunpack.c.h.b16 %v505
        %v524 = vunpack.c.l.b16 %v506
        %v525 = vunpack.c.h.b16 %v506
        %v526 = vunpack.c.l.b16 %v507
        %v527 = vunpack.c.h.b16 %v507
        %v528 = vunpack.c.l.b16 %v508
        %v529 = vunpack.c.h.b16 %v508
        %v530 = vunpack.c.l.b16 %v509
        %v531 = vunpack.c.h.b16 %v509
        %v532 = vunpack.c.l.b16 %v510
        %v533 = vunpack.c.h.b16 %v510
        %v534 = vunpack.c.l.b16 %v511
        %v535 = vunpack.c.h.b16 %v511
        %v536 = vpack.c.b16 %v520, %v520
        %v537 = vpack.c.b16 %v521, %v521
        %v538 = vpack.c.b16 %v522, %v522
        %v539 = vpack.c.b16 %v523, %v523
        %v540 = vpack.c.b16 %v524, %v524
        %v541 = vpack.c.b16 %v525, %v525
        %v542 = vpack.c.b16 %v526, %v526
        %v543 = vpack.c.b16 %v527, %v527
        %v544 = vpack.c.b16 %v528, %v528
        %v545 = vpack.c.b16 %v529, %v529
        %v546 = vpack.c.b16 %v530, %v530
        %v547 = vpack.c.b16 %v531, %v531
        %v548 = vpack.c.b16 %v532, %v532
        %v549 = vpack.c.b16 %v533, %v533
        %v550 = vpack.c.b16 %v534, %v534
        %v551 = vpack.c.b16 %v535, %v535
        %568 = vst [vmem:[%s265] sm:$0xf] %v536
        %569 = vst [vmem:[%s265 + $0x4] sm:$0xf] %v537
        %570 = vst [vmem:[%s265 + $0x8] sm:$0xf] %v538
        %571 = vst [vmem:[%s265 + $0xc] sm:$0xf] %v539
        %572 = vst [vmem:[%s265 + $0x10] sm:$0xf] %v540
        %573 = vst [vmem:[%s265 + $0x14] sm:$0xf] %v541
        %574 = vst [vmem:[%s265 + $0x18] sm:$0xf] %v542
        %575 = vst [vmem:[%s265 + $0x1c] sm:$0xf] %v543
        %576 = vst [vmem:[%s265 + $0x20] sm:$0xf] %v544
        %577 = vst [vmem:[%s265 + $0x24] sm:$0xf] %v545
        %578 = vst [vmem:[%s265 + $0x28] sm:$0xf] %v546
        %579 = vst [vmem:[%s265 + $0x2c] sm:$0xf] %v547
        %580 = vst [vmem:[%s265 + $0x30] sm:$0xf] %v548
        %581 = vst [vmem:[%s265 + $0x34] sm:$0xf] %v549
        %582 = vst [vmem:[%s265 + $0x38] sm:$0xf] %v550
        %583 = vst [vmem:[%s265 + $0x3c] sm:$0xf] %v551
        %s584 = sand.u32 %s134, 1
        %s585 = scalar_lea.sflag [#allocation4], %s584
        %s586 = sand.u32 %s134, 1
        %s587 = smul.addr %s586, 64
        %s588 = scalar_lea.vmem [#allocation7], %s587
        // Predicated region
        $region41: #{tpu_custom_call.1} parent=31 // pred_check
          %p589 = pneg %p144
        $region42: #{tpu_custom_call.1} parent=31 // pred_check_branch
          %591 = sbr.rel (%p589) target = $region44
        $region43: #{tpu_custom_call.1} parent=31 // pred_region
          %s592 = smul.u32 16, %s30
          %s594 = ssub.s32 1024, 1024
          %595 = vsyncadd %s585, %s594
          %s596 = smul.addr %s592, 3
          %s597 = sadd.s32 %s28, %s596
          %s598 = smul.addr %s29, 48
          %s599 = sadd.s32 %s597, %s598
          %s600 = smul.addr %s599, 64
          %s601 = scalar_lea.hbm %s3, %s600
          %s602 = sshll.u32 %s588, 4
          %s603 = int_to_ptr.vmem [resolvable:$true] %s602
          %608 = dma.vmem_to_hbm [thread:$0]  %s603, 1024, %s601, %s585, 64, 192, 4
        $region44: #{tpu_custom_call.1} parent=31 // pred_fallthru
          _
      $region32: #{tpu_custom_call.1} parent=5 // pred_fallthru
        _
      %p609 = scmp.le.s32.totalorder 2, %s18
      // Predicated region
      $region45: #{tpu_custom_call.1} parent=5 // pred_check
        %p610 = pneg %p609
      $region46: #{tpu_custom_call.1} parent=5 // pred_check_branch
        %612 = sbr.rel (%p610) target = $region48
      $region47: #{tpu_custom_call.1} parent=5 // pred_region
        %s613 = ssub.s32 %s18, 2
        // Predicated region
        $region49: #{tpu_custom_call.1} parent=47 // pred_check
          %p614 = pneg %p150
        $region50: #{tpu_custom_call.1} parent=47 // pred_check_branch
          %616 = sbr.rel (%p614) target = $region52
        $region51: #{tpu_custom_call.1} parent=47 // pred_region
          %s617 = sand.u32 %s135, 1
          %s618 = scalar_lea.sflag [#allocation4], %s617
          %s619 = sand.u32 %s135, 1
          %s620 = smul.addr %s619, 64
          %s621 = scalar_lea.vmem [#allocation7], %s620
          %622 = dma.done %s618, 1024
        $region52: #{tpu_custom_call.1} parent=47 // pred_fallthru
          _
      $region48: #{tpu_custom_call.1} parent=5 // pred_fallthru
        _
    $region6: #{tpu_custom_call.1} parent=1 // loop_footer
      %s22 = sadd.s32 1, %s18
    $region7: #{tpu_custom_call.1} parent=1 // loop_footer_branch
      %17 = sbr.rel target = $region3
    $region8: #{tpu_custom_call.1} parent=1 // loop_exit
      _
    %623 = vsyncpa [#allocation3], 1
    %s624 = scalar_lea.sflag [#allocation3], 1
    %625 = vsyncpa %s624, 1
    %626 = vsyncpa [#allocation6], 1
    %s627 = scalar_lea.sflag [#allocation6], 1
    %628 = vsyncpa %s627, 1
    %629 = vsyncpa [#allocation4], 1
    %s630 = scalar_lea.sflag [#allocation4], 1
    %631 = vsyncpa %s630, 1

</llo_original>
